<compile_context>
chip_gen: v7x
topology: tpu7x:2x2x1
jax: 0.10.0
libtpu: 0.0.40
codegen_flags: <defaults>
</compile_context>

<pallas_src>
import functools

import jax
import jax.numpy as jnp
from jax.experimental import pallas as pl
from jax.experimental.pallas import tpu as pltpu

_LANES = 128


def _argmax_loss_kernel(desired_ref, default_ref, x_ref, loss_ref,
                        m_lane_ref, r_lane_ref, *, rows_total, mask_tail):
    """One grid step = one (Rc, 128) chunk of the last-token vocab row.

    m_lane_ref : (1,128) f32  running per-lane max over all chunks seen so far
    r_lane_ref : (1,128) i32  global row index of the FIRST occurrence of that max
    """
    i = pl.program_id(0)
    nc = pl.num_programs(0)

    @pl.when(i == 0)
    def _init():
        m_lane_ref[...] = jnp.full(m_lane_ref.shape, -jnp.inf, m_lane_ref.dtype)
        r_lane_ref[...] = jnp.zeros(r_lane_ref.shape, r_lane_ref.dtype)

    x = x_ref[...]                                   # (Rc, 128), native dtype
    rc = x.shape[0]
    rows = jax.lax.broadcasted_iota(jnp.int32, (rc, 1), 0)   # local row ids

    if mask_tail:
        # Last chunk may extend past the real rows; the DMA'd tail is undefined,
        # so neutralize it (never wins the max).
        grow = rows + i * rc
        x = jnp.where(grow < rows_total, x, -jnp.inf)

    # Single sweep: per-lane chunk max + first row achieving it (sublane-first).
    cm = jnp.max(x, axis=0, keepdims=True)                       # (1,128)
    hit = (x == cm)
    first_local = jnp.min(jnp.where(hit, rows, jnp.int32(rc)),
                          axis=0, keepdims=True)                 # (1,128) i32

    # Cross-chunk combine: strictly-greater wins, ties keep the earlier (lower)
    # row -> preserves torch.argmax first-occurrence tie-breaking.
    cm_f32 = cm.astype(jnp.float32)
    better = cm_f32 > m_lane_ref[...]
    m_lane_ref[...] = jnp.where(better, cm_f32, m_lane_ref[...])
    r_lane_ref[...] = jnp.where(better, first_local + i * rc, r_lane_ref[...])

    @pl.when(i == nc - 1)
    def _finalize():
        m = m_lane_ref[...]                                      # (1,128)
        gmax = jnp.max(m)                                        # 128-lane XLU finish
        lane = jax.lax.broadcasted_iota(jnp.int32, (1, _LANES), 1)
        flat = r_lane_ref[...] * jnp.int32(_LANES) + lane        # flat vocab id
        idx = jnp.min(jnp.where(m == gmax, flat, jnp.int32(2 ** 30)))
        loss_ref[0] = jnp.where(idx == desired_ref[0],
                                jnp.float32(0.0), default_ref[0])


def custom_loss(outputs, desired_token_id, default_loss, *, max_chunk_rows=512):
    """JAX/Pallas equivalent of CustomLoss.forward.

    outputs: tuple whose element [1] is the logits tensor (B, S, V).
    desired_token_id: scalar int.
    default_loss: scalar float.
    max_chunk_rows: rows (of 128 lanes) per pipelined chunk; vocabs with
        V <= 128 * max_chunk_rows use a single block.
    """
    logits = outputs[1]
    B, S, V = logits.shape
    assert B == 1, "CustomLoss compares a scalar prediction; batch must be 1"

    if V % _LANES == 0:
        # Metadata-only reshape: the last-token slice stays fused in the
        # index_map, so only V elements are DMA'd from HBM.
        R = V // _LANES
        row4d = logits.reshape(B, S, R, _LANES)
        s_idx = S - 1
    else:
        # Pad ONLY the last-token vocab row with -inf up to a multiple of
        # 8*128 so every vreg keeps full (8,128) occupancy.
        row = logits[:, S - 1:S, :]                          # (1, 1, V)
        v_pad = -(-V // (8 * _LANES)) * (8 * _LANES)
        row = jnp.pad(row, ((0, 0), (0, 0), (0, v_pad - V)),
                      constant_values=-jnp.inf)
        R = v_pad // _LANES
        row4d = row.reshape(B, 1, R, _LANES)
        s_idx = 0

    # Chunk the row axis so the DMA of chunk i+1 overlaps the reduce of chunk i.
    rc_target = max(8, (int(max_chunk_rows) // 8) * 8)
    if R <= rc_target:
        Rc, nc = R, 1                 # single full block (full-dim, always legal)
    else:
        Rc = rc_target                # multiple of 8 -> legal (8,128) sub-block
        nc = -(-R // Rc)
    mask_tail = (nc * Rc) != R

    desired = jnp.asarray(desired_token_id, jnp.int32).reshape(1)
    default = jnp.asarray(default_loss, jnp.float32).reshape(1)

    kernel = functools.partial(_argmax_loss_kernel,
                               rows_total=R, mask_tail=mask_tail)

    loss = pl.pallas_call(
        kernel,
        out_shape=jax.ShapeDtypeStruct((1,), jnp.float32),
        grid=(nc,),
        in_specs=[
            pl.BlockSpec(memory_space=pltpu.SMEM),     # desired_token_id scalar
            pl.BlockSpec(memory_space=pltpu.SMEM),     # default_loss scalar
            # (Rc, 128) chunk of the last-token vocab row; leading dims squeezed.
            pl.BlockSpec((None, None, Rc, _LANES), lambda i: (0, s_idx, i, 0)),
        ],
        out_specs=pl.BlockSpec(memory_space=pltpu.SMEM),
        scratch_shapes=[
            pltpu.VMEM((1, _LANES), jnp.float32),      # running per-lane max
            pltpu.VMEM((1, _LANES), jnp.int32),        # first row achieving it
        ],
        compiler_params=pltpu.CompilerParams(
            dimension_semantics=("arbitrary",)),       # carried reduction axis
    )(desired, default, row4d)
    # TODO(synk): torch.tensor(0.0, requires_grad=True) autograd semantics have
    # no forward-pass equivalent; only the forward value is produced here.
    return loss[0]


if __name__ == "__main__":
    key = jax.random.PRNGKey(0)
    B, S, H = 1, 8, 32
    default_loss = jnp.float32(3.5)

    # (name, vocab size, max_chunk_rows) — exercises the 128-multiple single-block
    # path, the -inf padded path (V % 128 != 0), and the chunked/pipelined path
    # with a partial (masked) tail chunk.
    cases = (("mult128_single", 384, 512),
             ("padded_vocab", 250, 512),
             ("chunked_tail", 3584, 8))

    for name, V, max_rows in cases:
        key, k_h, k_l = jax.random.split(key, 3)
        hidden_states = jax.random.normal(k_h, (B, S, H), dtype=jnp.float32)
        logits = jax.random.normal(k_l, (B, S, V), dtype=jnp.float32)
        outputs = (hidden_states, logits)

        # reference prediction (argmax of softmax == argmax of logits)
        ref_pred = int(jnp.argmax(logits[0, -1, :]))

        loss_hit = custom_loss(outputs, ref_pred, default_loss,
                               max_chunk_rows=max_rows)
        loss_miss = custom_loss(outputs, (ref_pred + 1) % V, default_loss,
                                max_chunk_rows=max_rows)
        jax.block_until_ready((loss_hit, loss_miss))

        assert float(loss_hit) == 0.0, (name, float(loss_hit))
        assert float(loss_miss) == float(default_loss), (name, float(loss_miss))

    print("KERNEL_OK")
</pallas_src>

<mosaic_0001>
module attributes {stable_mosaic.version = 11 : i64} {
  func.func @_argmax_loss_kernel(%arg0: i32, %arg1: memref<1xi32, #tpu.memory_space<smem>>, %arg2: memref<1xf32, #tpu.memory_space<smem>>, %arg3: memref<1x1x3x128xf32, #tpu.memory_space<vmem>>, %arg4: memref<1xf32, #tpu.memory_space<smem>>, %arg5: memref<1x128xf32, #tpu.memory_space<vmem>>, %arg6: memref<1x128xi32, #tpu.memory_space<vmem>>) attributes {dimension_semantics = [#tpu.dimension_semantics<arbitrary>], iteration_bounds = array<i64: 1>, scalar_prefetch = 0 : i64, scratch_operands = 2 : i64, tpu.core_type = #tpu.core_type<tc>, window_params = [{transform_indices = @transform_0, window_bounds = array<i64: 1>}, {transform_indices = @transform_1, window_bounds = array<i64: 1>}, {transform_indices = @transform_2, window_bounds = array<i64: 1, 1, 3, 128>}, {transform_indices = @transform_3, window_bounds = array<i64: 1>}]} {
    %c0_i32 = arith.constant 0 : i32
    %0 = arith.cmpi eq, %arg0, %c0_i32 : i32
    %1 = arith.extui %0 : i1 to i32
    %c0_i32_0 = arith.constant 0 : i32
    %2 = arith.cmpi ne, %1, %c0_i32_0 : i32
    scf.if %2 {
      %cst_18 = arith.constant 0xFF800000 : f32
      %30 = vector.broadcast %cst_18 : f32 to vector<1x128xf32>
      %c0_19 = arith.constant 0 : index
      %c0_20 = arith.constant 0 : index
      %31 = vector.load %arg5[%c0_19, %c0_20] : memref<1x128xf32, #tpu.memory_space<vmem>>, vector<1x128xf32>
      tpu.vector_store %arg5[%c0_19, %c0_20], %30 {strides = array<i32>} : memref<1x128xf32, #tpu.memory_space<vmem>>, vector<1x128xf32>,
      %c0_i32_21 = arith.constant 0 : i32
      %32 = vector.broadcast %c0_i32_21 : i32 to vector<1x128xi32>
      %c0_22 = arith.constant 0 : index
      %c0_23 = arith.constant 0 : index
      %33 = vector.load %arg6[%c0_22, %c0_23] : memref<1x128xi32, #tpu.memory_space<vmem>>, vector<1x128xi32>
      tpu.vector_store %arg6[%c0_22, %c0_23], %32 {strides = array<i32>} : memref<1x128xi32, #tpu.memory_space<vmem>>, vector<1x128xi32>,
    } else {
    }
    %c0 = arith.constant 0 : index
    %c0_1 = arith.constant 0 : index
    %c0_2 = arith.constant 0 : index
    %c0_3 = arith.constant 0 : index
    %3 = vector.load %arg3[%c0, %c0_1, %c0_2, %c0_3] : memref<1x1x3x128xf32, #tpu.memory_space<vmem>>, vector<1x1x3x128xf32>
    %4 = vector.shape_cast %3 : vector<1x1x3x128xf32> to vector<3x128xf32>
    %5 = tpu.iota {dimensions = array<i32: 0>} : vector<3x1xi32>
    %cst = arith.constant dense<0xFF800000> : vector<128xf32>
    %6 = vector.multi_reduction <maximumf>, %4, %cst [0] : vector<3x128xf32> to vector<128xf32>
    %7 = vector.shape_cast %6 : vector<128xf32> to vector<1x128xf32>
    %8 = vector.broadcast %7 : vector<1x128xf32> to vector<3x128xf32>
    %9 = arith.cmpf oeq, %4, %8 : vector<3x128xf32>
    %c3_i32 = arith.constant 3 : i32
    %10 = vector.shape_cast %5 : vector<3x1xi32> to vector<3x1xi32>
    %11 = vector.broadcast %10 : vector<3x1xi32> to vector<3x128xi32>
    %12 = vector.broadcast %c3_i32 : i32 to vector<3x128xi32>
    %13 = arith.select %9, %11, %12 : vector<3x128xi1>, vector<3x128xi32>
    %cst_4 = arith.constant dense<2147483647> : vector<128xi32>
    %14 = vector.multi_reduction <minsi>, %13, %cst_4 [0] : vector<3x128xi32> to vector<128xi32>
    %15 = vector.shape_cast %14 : vector<128xi32> to vector<1x128xi32>
    %c0_5 = arith.constant 0 : index
    %c0_6 = arith.constant 0 : index
    %16 = vector.load %arg5[%c0_5, %c0_6] : memref<1x128xf32, #tpu.memory_space<vmem>>, vector<1x128xf32>
    %17 = arith.cmpf ogt, %7, %16 : vector<1x128xf32>
    %c0_7 = arith.constant 0 : index
    %c0_8 = arith.constant 0 : index
    %18 = vector.load %arg5[%c0_7, %c0_8] : memref<1x128xf32, #tpu.memory_space<vmem>>, vector<1x128xf32>
    %19 = arith.select %17, %7, %18 : vector<1x128xi1>, vector<1x128xf32>
    %c0_9 = arith.constant 0 : index
    %c0_10 = arith.constant 0 : index
    %20 = vector.load %arg5[%c0_9, %c0_10] : memref<1x128xf32, #tpu.memory_space<vmem>>, vector<1x128xf32>
    tpu.vector_store %arg5[%c0_9, %c0_10], %19 {strides = array<i32>} : memref<1x128xf32, #tpu.memory_space<vmem>>, vector<1x128xf32>,
    %c3_i32_11 = arith.constant 3 : i32
    %21 = arith.muli %arg0, %c3_i32_11 : i32
    %22 = vector.broadcast %21 : i32 to vector<1x128xi32>
    %23 = arith.addi %15, %22 : vector<1x128xi32>
    %c0_12 = arith.constant 0 : index
    %c0_13 = arith.constant 0 : index
    %24 = vector.load %arg6[%c0_12, %c0_13] : memref<1x128xi32, #tpu.memory_space<vmem>>, vector<1x128xi32>
    %25 = arith.select %17, %23, %24 : vector<1x128xi1>, vector<1x128xi32>
    %c0_14 = arith.constant 0 : index
    %c0_15 = arith.constant 0 : index
    %26 = vector.load %arg6[%c0_14, %c0_15] : memref<1x128xi32, #tpu.memory_space<vmem>>, vector<1x128xi32>
    tpu.vector_store %arg6[%c0_14, %c0_15], %25 {strides = array<i32>} : memref<1x128xi32, #tpu.memory_space<vmem>>, vector<1x128xi32>,
    %c0_i32_16 = arith.constant 0 : i32
    %27 = arith.cmpi eq, %arg0, %c0_i32_16 : i32
    %28 = arith.extui %27 : i1 to i32
    %c0_i32_17 = arith.constant 0 : i32
    %29 = arith.cmpi ne, %28, %c0_i32_17 : i32
    scf.if %29 {
      %c0_18 = arith.constant 0 : index
      %c0_19 = arith.constant 0 : index
      %30 = vector.load %arg5[%c0_18, %c0_19] : memref<1x128xf32, #tpu.memory_space<vmem>>, vector<1x128xf32>
      %31 = vector.shape_cast %30 : vector<1x128xf32> to vector<1x1x128xf32>
      %cst_20 = arith.constant dense<0xFF800000> : vector<1xf32>
      %32 = vector.multi_reduction <maximumf>, %31, %cst_20 [1, 2] : vector<1x1x128xf32> to vector<1xf32>
      %33 = vector.shape_cast %32 : vector<1xf32> to vector<1x1x1xf32>
      %34 = vector.extract %33[0, 0, 0] : f32 from vector<1x1x1xf32>
      %35 = tpu.iota {dimensions = array<i32: 1>} : vector<1x128xi32>
      %c0_21 = arith.constant 0 : index
      %c0_22 = arith.constant 0 : index
      %36 = vector.load %arg6[%c0_21, %c0_22] : memref<1x128xi32, #tpu.memory_space<vmem>>, vector<1x128xi32>
      %c128_i32 = arith.constant 128 : i32
      %37 = vector.broadcast %c128_i32 : i32 to vector<1x128xi32>
      %38 = arith.muli %36, %37 : vector<1x128xi32>
      %39 = arith.addi %38, %35 : vector<1x128xi32>
      %40 = vector.broadcast %34 : f32 to vector<1x128xf32>
      %41 = arith.cmpf oeq, %30, %40 : vector<1x128xf32>
      %c1073741824_i32 = arith.constant 1073741824 : i32
      %42 = vector.broadcast %c1073741824_i32 : i32 to vector<1x128xi32>
      %43 = arith.select %41, %39, %42 : vector<1x128xi1>, vector<1x128xi32>
      %44 = vector.shape_cast %43 : vector<1x128xi32> to vector<1x1x128xi32>
      %cst_23 = arith.constant dense<2147483647> : vector<1xi32>
      %45 = vector.multi_reduction <minsi>, %44, %cst_23 [1, 2] : vector<1x1x128xi32> to vector<1xi32>
      %46 = vector.shape_cast %45 : vector<1xi32> to vector<1x1x1xi32>
      %47 = vector.extract %46[0, 0, 0] : i32 from vector<1x1x1xi32>
      %c0_24 = arith.constant 0 : index
      %48 = memref.load %arg1[%c0_24] : memref<1xi32, #tpu.memory_space<smem>>
      %49 = arith.cmpi eq, %47, %48 : i32
      %c0_25 = arith.constant 0 : index
      %50 = memref.load %arg2[%c0_25] : memref<1xf32, #tpu.memory_space<smem>>
      %cst_26 = arith.constant 0.000000e+00 : f32
      %51 = arith.select %49, %cst_26, %50 : f32
      %c0_27 = arith.constant 0 : index
      %52 = memref.load %arg4[%c0_27] : memref<1xf32, #tpu.memory_space<smem>>
      memref.store %51, %arg4[%c0_27] : memref<1xf32, #tpu.memory_space<smem>>
    } else {
    }
    return
  }
  func.func @transform_0(%arg0: i32) -> i32 {
    %c0_i32 = arith.constant 0 : i32
    %c0_i32_0 = arith.constant 0 : i32
    return %c0_i32 : i32
  }
  func.func @transform_1(%arg0: i32) -> i32 {
    %c0_i32 = arith.constant 0 : i32
    %c0_i32_0 = arith.constant 0 : i32
    return %c0_i32 : i32
  }
  func.func @transform_2(%arg0: i32) -> (i32, i32, i32, i32) {
    %c0_i32 = arith.constant 0 : i32
    %c7_i32 = arith.constant 7 : i32
    %c0_i32_0 = arith.constant 0 : i32
    %c0_i32_1 = arith.constant 0 : i32
    return %c0_i32, %c7_i32, %arg0, %c0_i32_0 : i32, i32, i32, i32
  }
  func.func @transform_3(%arg0: i32) -> i32 {
    %c0_i32 = arith.constant 0 : i32
    %c0_i32_0 = arith.constant 0 : i32
    return %c0_i32 : i32
  }
}

</mosaic_0001>

<llo_original>
// kernel: tpu_custom_call.1
$region0: #{tpu_custom_call.1}
  #allocation0 [shape = 'u32[]', space=smem, size = 0x4, offset = 0x4, fixed_abs, tag = 'smem constant byte address 0x4 - core index']
  #allocation1 [shape = 'u32[144,128]{1,0:T(1,128)}', space=vmem, size = 0x12000, scoped, tag = 'internal scratch']
  #allocation2 [shape = 'f32[1,128]{1,0:T(1,128)}', space=vmem, size = 0x200, scoped, tag = 'scratch operand']
  #allocation3 [shape = 's32[1,128]{1,0:T(1,128)}', space=vmem, size = 0x200, scoped, tag = 'scratch operand']
  #allocation4 [shape = 's32[1]{0:T(128)S(6)}', space=smem, size = 0x200, scoped, tag = 'scoped memory for tpu_custom_call.1']
  #allocation5 [shape = 'f32[1]{0:T(128)S(6)}', space=smem, size = 0x200, scoped, tag = 'scoped memory for tpu_custom_call.1']
  %s0 = inlined_call_operand.<no memory space> [shape: s32[1], index: 0, kind: input, shape index: {}]
  %s1 = inlined_call_operand.<no memory space> [shape: f32[1], index: 1, kind: input, shape index: {}]
  %s2 = inlined_call_operand.vmem [shape: f32[1,8,3,128], index: 2, kind: input, shape index: {}]
  %s3 = inlined_call_operand.hbm [shape: f32[1], index: 3, kind: output, shape index: {}]
  %s4 = sld [smem:[#allocation0]]
  $region30: #{tpu_custom_call.1} parent=0
    _
  %s6 = ssub.s32 1, %s4
  %s7 = scalar_select 0, %s6, %s4
  %8 = sst [smem:[#allocation4]] %s0
  %9 = sst [smem:[#allocation5]] %s1
  $region1: #{tpu_custom_call.1} parent=0
    #allocation6 [shape = 'u8[512]{0}', space=smem, size = 0x200, scoped, tag = 'output window, operand 0, single buffered']
    #allocation7 [shape = 's32[1]{0}', space=sflag, size = 0x4, scoped, tag = 'scoped memory for tpu_custom_call.1']
    %10 = vsyncpa [#allocation7], 0
    // Predicated region
    $region2: #{tpu_custom_call.1} parent=1 // pred_check
      _
    $region3: #{tpu_custom_call.1} parent=1 // pred_check_branch
      %12 = sbr.rel (0) target = $region5
    $region4: #{tpu_custom_call.1} parent=1 // pred_region
      _
    $region5: #{tpu_custom_call.1} parent=1 // pred_fallthru
      _
    // Predicated region
    $region6: #{tpu_custom_call.1} parent=1 // pred_check
      _
    $region7: #{tpu_custom_call.1} parent=1 // pred_check_branch
      %14 = sbr.rel (0) target = $region9
    $region8: #{tpu_custom_call.1} parent=1 // pred_region
      _
    $region9: #{tpu_custom_call.1} parent=1 // pred_fallthru
      _
    // Predicated region
    $region10: #{tpu_custom_call.1} parent=1 // pred_check
      _
    $region11: #{tpu_custom_call.1} parent=1 // pred_check_branch
      %16 = sbr.rel (0) target = $region13
    $region12: #{tpu_custom_call.1} parent=1 // pred_region
      %s17 = scalar_lea.vmem %s2, 28
    $region13: #{tpu_custom_call.1} parent=1 // pred_fallthru
      _
    %s18 = scalar_lea.vmem %s2, 28
    %s19 = scalar_lea.vmem %s2, 28
    %p20 = scmp.eq.s32.totalorder 0, 0
    // Predicated region
    $region14: #{tpu_custom_call.1} parent=1 // pred_check
      %p21 = pneg %p20
    $region15: #{tpu_custom_call.1} parent=1 // pred_check_branch
      %23 = sbr.rel (%p21) target = $region17
    $region16: #{tpu_custom_call.1} parent=1 // pred_region
      %24 = vst [vmem:[#allocation2] sm:$0x1] -inf
      %25 = vst [vmem:[#allocation3] sm:$0x1] 0
    $region17: #{tpu_custom_call.1} parent=1 // pred_fallthru
      _
    %v26 = vld [vmem:[%s19] sm:$0x7]
    %v27 = vlaneseq
    %v28 = vshrl.u32 %v27, 7
    %vm29 = vcmask 1042432
    %v30 = vsel %vm29, %v26, -inf
    %v31 = vrot.slane %v30, 4
    %v32 = vmax.f32 %v30, %v31
    %v33 = vrot.slane %v32, 2
    %v34 = vmax.f32 %v32, %v33
    %v35 = vrot.slane %v34, 1
    %v36 = vmax.f32 %v34, %v35
    %vm37 = vcmp.eq.f32.partialorder %v26, %v36
    %v38 = vsel %vm37, %v28, 3
    %v39 = vsel %vm29, %v38, 2147483647
    %v40 = vrot.slane %v39, 4
    %vm41 = vcmp.lt.s32.totalorder %v39, %v40
    %v42 = vsel %vm41, %v39, %v40
    %v43 = vrot.slane %v42, 2
    %vm44 = vcmp.lt.s32.totalorder %v42, %v43
    %v45 = vsel %vm44, %v42, %v43
    %v46 = vrot.slane %v45, 1
    %vm47 = vcmp.lt.s32.totalorder %v45, %v46
    %v48 = vsel %vm47, %v45, %v46
    %v49 = vld [vmem:[#allocation2] sm:$0x1]
    %vm50 = vcmp.gt.f32.partialorder %v36, %v49
    %v51 = vsel %vm50, %v36, %v49
    %52 = vst [vmem:[#allocation2] sm:$0x1] %v51
    %s53 = smul.u32 0, 3
    %v54 = vstv %s53
    %v55 = vadd.s32 %v48, %v54
    %v56 = vld [vmem:[#allocation3] sm:$0x1]
    %v57 = vsel %vm50, %v55, %v56
    %58 = vst [vmem:[#allocation3] sm:$0x1] %v57
    // Predicated region
    $region18: #{tpu_custom_call.1} parent=1 // pred_check
      %p59 = pneg %p20
    $region19: #{tpu_custom_call.1} parent=1 // pred_check_branch
      %61 = sbr.rel (%p59) target = $region21
    $region20: #{tpu_custom_call.1} parent=1 // pred_region
      %v62 = vld [vmem:[#allocation2] sm:$0x1]
      %vm63 = vcmask 1040384
      %v64 = vsel %vm63, %v62, -inf
      %65 = vmax.xlane.f32.xlu0 %v64
      %v66 = vpop.xlane.xlu0 %65
      %v67 = vrot.slane %v66, 4
      %v68 = vmax.f32 %v66, %v67
      %v69 = vrot.slane %v68, 2
      %v70 = vmax.f32 %v68, %v69
      %v71 = vrot.slane %v70, 1
      %v72 = vmax.f32 %v70, %v71
      %s73 = vtos %v72
      %v74 = vlaneseq
      %v75 = vand.u32 %v74, 127
      %v76 = vld [vmem:[#allocation3] sm:$0x1]
      %v77 = vmul.u32 %v76, 128
      %v78 = vadd.s32 %v77, %v75
      %v79 = vstv %s73
      %vm80 = vcmp.eq.f32.partialorder %v62, %v79
      %v81 = vsel %vm80, %v78, 1073741824
      %v82 = vsel %vm63, %v81, 2147483647
      %v83 = vand.u32 %v82, 65535
      %v84 = vshra.s32 %v82, 16
      %v85 = vcvt.s32.f32 %v83
      %v86 = vcvt.s32.f32 %v84
      %87 = vmin.xlane.f32.xlu0 %v86
      %v88 = vpop.xlane.xlu0 %87
      %vm89 = vcmp.eq.f32.partialorder %v86, %v88
      %v90 = vsel %vm89, %v85, inf
      %91 = vmin.xlane.f32.xlu0 %v90
      %v92 = vpop.xlane.xlu0 %91
      %v93 = vcvt.f32.s32 %v92
      %v94 = vcvt.f32.s32 %v88
      %v95 = vshll.u32 %v94, 16
      %v96 = vadd.s32 %v95, %v93
      %v97 = vrot.slane %v96, 4
      %vm98 = vcmp.lt.s32.totalorder %v96, %v97
      %v99 = vsel %vm98, %v96, %v97
      %v100 = vrot.slane %v99, 2
      %vm101 = vcmp.lt.s32.totalorder %v99, %v100
      %v102 = vsel %vm101, %v99, %v100
      %v103 = vrot.slane %v102, 1
      %vm104 = vcmp.lt.s32.totalorder %v102, %v103
      %v105 = vsel %vm104, %v102, %v103
      %s106 = vtos %v105
      %s107 = sld [smem:[#allocation4]]
      %p108 = scmp.eq.s32.totalorder %s106, %s107
      %s109 = sld [smem:[#allocation5]]
      %s110 = scalar_select %p108, 0.0, %s109
      %s111 = scalar_lea.smem [#allocation6], 0
      %112 = sst [smem:[%s111]] %s110
    $region21: #{tpu_custom_call.1} parent=1 // pred_fallthru
      _
    // Predicated region
    $region22: #{tpu_custom_call.1} parent=1 // pred_check
      _
    $region23: #{tpu_custom_call.1} parent=1 // pred_check_branch
      %114 = sbr.rel (0) target = $region25
    $region24: #{tpu_custom_call.1} parent=1 // pred_region
      %s116 = ssub.s32 16, 16
      %117 = vsyncadd [#allocation7], %s116
      %120 = dma.smem_to_hbm [#allocation6], 16, %s3, [#allocation7]
    $region25: #{tpu_custom_call.1} parent=1 // pred_fallthru
      _
    // Predicated region
    $region26: #{tpu_custom_call.1} parent=1 // pred_check
      _
    $region27: #{tpu_custom_call.1} parent=1 // pred_check_branch
      %122 = sbr.rel (0) target = $region29
    $region28: #{tpu_custom_call.1} parent=1 // pred_region
      %123 = dma.done [#allocation7], 16
    $region29: #{tpu_custom_call.1} parent=1 // pred_fallthru
      _
    %124 = sfence
    %125 = vsyncpa [#allocation7], 1

</llo_original>
